<compile_context>
chip_gen: v5e
topology: v5e:2x2
jax: 0.10.0
libtpu: 0.0.40
codegen_flags: <defaults>
</compile_context>

<pallas_src>
import functools

import jax
import jax.numpy as jnp
from jax.experimental import pallas as pl
from jax.experimental.pallas import tpu as pltpu

LANE = 128


def _round_up(n, k):
    return ((n + k - 1) // k) * k


def ensemble_kernel(x_ref, w1_ref, b1_ref, w2_ref, b2_ref, o_ref, acc_ref):
    """One (batch-tile, K-tile) step of the fused ensemble MLP.

    x_ref:  (TB, D_in)        MXU dtype (f32 or bf16)
    w1_ref: (D_in, TK)        MXU dtype
    b1_ref: (1, TK)           f32
    w2_ref: (TK, D_OUT_PAD)   MXU dtype (already scaled by 1/M)
    b2_ref: (1, D_OUT_PAD)    f32       (already scaled by 1/M)
    o_ref:  (TB, D_OUT_PAD)
    acc_ref:(TB, D_OUT_PAD)   f32 VMEM accumulator over the K axis
    """
    k = pl.program_id(1)

    @pl.when(k == 0)
    def _():
        acc_ref[...] = jnp.zeros_like(acc_ref)

    # Layer 1 chunk on the MXU, f32 accumulation; bias + ReLU on the VPU in f32.
    h = jnp.dot(x_ref[...], w1_ref[...], preferred_element_type=jnp.float32)
    h = jnp.maximum(h + b1_ref[...], 0.0)

    # Layer 2 chunk: accumulate into the resident f32 output accumulator.
    acc_ref[...] += jnp.dot(
        h.astype(w2_ref.dtype), w2_ref[...], preferred_element_type=jnp.float32
    )

    @pl.when(k == pl.num_programs(1) - 1)
    def _():
        o_ref[...] = (acc_ref[...] + b2_ref[...]).astype(o_ref.dtype)


def fuse_ensemble_params(w1, b1, w2, b2, *, mxu_dtype=jnp.bfloat16, tk_target=512):
    """One-time (init-time) fusion of the M ensemble members into a single MLP.

    w1: [M, D_in, H]  b1: [M, H]  w2: [M, H, D_out]  b2: [M, D_out]
    Returns a dict of fused, padded, dtype-cast parameters + static tiling info.
    """
    M, d_in, h = w1.shape
    _, _, d_out = w2.shape
    mh = M * h

    # K tile over the fused hidden axis (multiple of 128 lanes).
    tk = min(int(tk_target), _round_up(mh, LANE))
    mh_pad = _round_up(mh, tk)
    d_out_pad = _round_up(d_out, LANE)
    inv_m = 1.0 / M

    # Concat members along the hidden axis: [D_in, M*H]; member-major ordering
    # is consistent between layer 1 (columns) and layer 2 (rows).
    w1c = jnp.transpose(w1, (1, 0, 2)).reshape(d_in, mh)
    b1c = b1.reshape(1, mh)
    # Stack members vertically and fold the 1/M average into layer 2.
    w2s = w2.reshape(mh, d_out) * inv_m
    b2s = jnp.sum(b2, axis=0, keepdims=True) * inv_m  # [1, D_out]

    # Zero-pad the hidden axis: padded hidden units stay exactly 0 through the
    # ReLU and multiply zero rows of w2s, so they contribute nothing.
    if mh_pad != mh:
        w1c = jnp.pad(w1c, ((0, 0), (0, mh_pad - mh)))
        b1c = jnp.pad(b1c, ((0, 0), (0, mh_pad - mh)))
        w2s = jnp.pad(w2s, ((0, mh_pad - mh), (0, 0)))
    # Zero-pad output lanes to a full 128-lane vreg (unmasked stores).
    if d_out_pad != d_out:
        w2s = jnp.pad(w2s, ((0, 0), (0, d_out_pad - d_out)))
        b2s = jnp.pad(b2s, ((0, 0), (0, d_out_pad - d_out)))

    return {
        "w1": w1c.astype(mxu_dtype),          # MXU input
        "b1": b1c.astype(jnp.float32),        # bias/ReLU on VPU in f32
        "w2": w2s.astype(mxu_dtype),          # MXU input (1/M folded in)
        "b2": b2s.astype(jnp.float32),
        "tk": tk,                             # static K tile size
        "d_out": int(d_out),                  # true output width
    }


def ensemble_forward(x, fused, *, tb=256):
    """x: [B, D_in]; fused: output of fuse_ensemble_params."""
    w1c, b1c, w2s, b2s = fused["w1"], fused["b1"], fused["w2"], fused["b2"]
    tk, d_out = fused["tk"], fused["d_out"]
    d_in, mh_pad = w1c.shape
    _, d_out_pad = w2s.shape
    B = x.shape[0]

    # Batch tile: multiple of 16 sublanes (safe for bf16 and f32), up to `tb`.
    TB = min(_round_up(tb, 16), _round_up(B, 16))
    b_pad = _round_up(B, TB)
    xp = x if b_pad == B else jnp.pad(x, ((0, b_pad - B), (0, 0)))
    xp = xp.astype(w1c.dtype)  # match MXU input dtype (bf16 or f32)

    num_b = b_pad // TB
    num_k = mh_pad // tk

    out_pad = pl.pallas_call(
        ensemble_kernel,
        out_shape=jax.ShapeDtypeStruct((b_pad, d_out_pad), x.dtype),
        grid_spec=pltpu.PrefetchScalarGridSpec(
            num_scalar_prefetch=0,
            grid=(num_b, num_k),
            in_specs=[
                pl.BlockSpec((TB, d_in), lambda i, k: (i, 0)),          # x tile
                pl.BlockSpec((d_in, tk), lambda i, k: (0, k)),          # W1 k-chunk
                pl.BlockSpec((1, tk), lambda i, k: (0, k)),             # b1 k-chunk
                pl.BlockSpec((tk, d_out_pad), lambda i, k: (k, 0)),     # W2 k-chunk
                pl.BlockSpec((1, d_out_pad), lambda i, k: (0, 0)),      # b2 (resident)
            ],
            out_specs=pl.BlockSpec((TB, d_out_pad), lambda i, k: (i, 0)),
            scratch_shapes=[pltpu.VMEM((TB, d_out_pad), jnp.float32)],
        ),
        compiler_params=pltpu.CompilerParams(
            # batch axis -> megacore-shardable on v7x; K axis is a reduction.
            dimension_semantics=("parallel", "arbitrary"),
        ),
    )(xp, w1c, b1c, w2s, b2s)

    return out_pad[:B, :d_out]


def ensemble_reference(x, w1, b1, w2, b2):
    """Pure-JAX reference mirroring Ensemble.forward (mean of member outputs)."""
    M = w1.shape[0]
    out = None
    for i in range(M):
        h = jnp.maximum(x @ w1[i] + b1[i], 0.0)
        y = h @ w2[i] + b2[i]
        out = y if out is None else out + y
    return out / M


if __name__ == "__main__":
    key = jax.random.PRNGKey(0)
    kx, kw1, kb1, kw2, kb2 = jax.random.split(key, 5)

    # small shapes: batch=8, in=32, hidden=64, out=16, ensemble of 4 members
    B, D_in, H, D_out, M = 8, 32, 64, 16, 4

    x = jax.random.normal(kx, (B, D_in), dtype=jnp.float32)
    w1 = jax.random.normal(kw1, (M, D_in, H), dtype=jnp.float32) * 0.1
    b1 = jax.random.normal(kb1, (M, H), dtype=jnp.float32) * 0.01
    w2 = jax.random.normal(kw2, (M, H, D_out), dtype=jnp.float32) * 0.1
    b2 = jax.random.normal(kb2, (M, D_out), dtype=jnp.float32) * 0.01

    ref = ensemble_reference(x, w1, b1, w2, b2)

    # f32 MXU path: matches the f32 reference to tight tolerance.
    fused_f32 = fuse_ensemble_params(w1, b1, w2, b2, mxu_dtype=jnp.float32)
    out_f32 = jax.block_until_ready(ensemble_forward(x, fused_f32))
    assert out_f32.shape == (B, D_out)
    assert jnp.allclose(out_f32, ref, atol=1e-4, rtol=1e-4), "f32 mismatch vs reference"

    # bf16 MXU-input path (production default): f32 accumulation, looser tol.
    fused_bf16 = fuse_ensemble_params(w1, b1, w2, b2, mxu_dtype=jnp.bfloat16)
    out_bf16 = jax.block_until_ready(ensemble_forward(x, fused_bf16))
    assert out_bf16.shape == (B, D_out)
    assert jnp.allclose(out_bf16, ref, atol=3e-2, rtol=3e-2), "bf16 mismatch vs reference"

    # TODO(synk): the hidden-axis zero-pad trick relies on ReLU(0)=0; it must be
    # revisited if members use an activation with f(0) != 0 (e.g. softplus).
    print("KERNEL_OK")
</pallas_src>

<mosaic_0001>
module attributes {stable_mosaic.version = 11 : i64} {
  func.func @ensemble_kernel(%arg0: i32, %arg1: i32, %arg2: memref<16x32xf32, #tpu.memory_space<vmem>>, %arg3: memref<32x256xf32, #tpu.memory_space<vmem>>, %arg4: memref<1x256xf32, #tpu.memory_space<vmem>>, %arg5: memref<256x128xf32, #tpu.memory_space<vmem>>, %arg6: memref<1x128xf32, #tpu.memory_space<vmem>>, %arg7: memref<16x128xf32, #tpu.memory_space<vmem>>, %arg8: memref<16x128xf32, #tpu.memory_space<vmem>>) attributes {dimension_semantics = [#tpu.dimension_semantics<parallel>, #tpu.dimension_semantics<arbitrary>], iteration_bounds = array<i64: 1, 1>, scalar_prefetch = 0 : i64, scratch_operands = 1 : i64, tpu.core_type = #tpu.core_type<tc>, window_params = [{transform_indices = @transform_0, window_bounds = array<i64: 16, 32>}, {transform_indices = @transform_1, window_bounds = array<i64: 32, 256>}, {transform_indices = @transform_2, window_bounds = array<i64: 1, 256>}, {transform_indices = @transform_3, window_bounds = array<i64: 256, 128>}, {pipeline_mode = #tpu.pipeline_mode<synchronous>, transform_indices = @transform_4, window_bounds = array<i64: 1, 128>}, {transform_indices = @transform_5, window_bounds = array<i64: 16, 128>}]} {
    %c0_i32 = arith.constant 0 : i32
    %0 = arith.cmpi eq, %arg1, %c0_i32 : i32
    %1 = arith.extui %0 : i1 to i32
    %c0_i32_0 = arith.constant 0 : i32
    %2 = arith.cmpi ne, %1, %c0_i32_0 : i32
    scf.if %2 {
      %cst_16 = arith.constant 0.000000e+00 : f32
      %19 = vector.broadcast %cst_16 : f32 to vector<16x128xf32>
      %c0_17 = arith.constant 0 : index
      %c0_18 = arith.constant 0 : index
      %20 = vector.load %arg8[%c0_17, %c0_18] : memref<16x128xf32, #tpu.memory_space<vmem>>, vector<16x128xf32>
      tpu.vector_store %arg8[%c0_17, %c0_18], %19 {strides = array<i32>} : memref<16x128xf32, #tpu.memory_space<vmem>>, vector<16x128xf32>,
    } else {
    }
    %c0 = arith.constant 0 : index
    %c0_1 = arith.constant 0 : index
    %3 = vector.load %arg2[%c0, %c0_1] : memref<16x32xf32, #tpu.memory_space<vmem>>, vector<16x32xf32>
    %c0_2 = arith.constant 0 : index
    %c0_3 = arith.constant 0 : index
    %4 = vector.load %arg3[%c0_2, %c0_3] : memref<32x256xf32, #tpu.memory_space<vmem>>, vector<32x256xf32>
    %cst = arith.constant dense<0.000000e+00> : vector<16x256xf32>
    %5 = tpu.matmul %3, %4, %cst {dimension_numbers = #tpu.dot_dimension_numbers<[1], [0], [0], [1], [0, 0, 1, 1], [], []>} : vector<16x32xf32>, vector<32x256xf32>, vector<16x256xf32> -> vector<16x256xf32>
    %c0_4 = arith.constant 0 : index
    %c0_5 = arith.constant 0 : index
    %6 = vector.load %arg4[%c0_4, %c0_5] : memref<1x256xf32, #tpu.memory_space<vmem>>, vector<1x256xf32>
    %7 = vector.broadcast %6 : vector<1x256xf32> to vector<16x256xf32>
    %8 = arith.addf %5, %7 : vector<16x256xf32>
    %cst_6 = arith.constant 0.000000e+00 : f32
    %9 = vector.broadcast %cst_6 : f32 to vector<16x256xf32>
    %10 = arith.maximumf %8, %9 : vector<16x256xf32>
    %c0_7 = arith.constant 0 : index
    %c0_8 = arith.constant 0 : index
    %11 = vector.load %arg8[%c0_7, %c0_8] : memref<16x128xf32, #tpu.memory_space<vmem>>, vector<16x128xf32>
    %c0_9 = arith.constant 0 : index
    %c0_10 = arith.constant 0 : index
    %12 = vector.load %arg5[%c0_9, %c0_10] : memref<256x128xf32, #tpu.memory_space<vmem>>, vector<256x128xf32>
    %cst_11 = arith.constant dense<0.000000e+00> : vector<16x128xf32>
    %13 = tpu.matmul %10, %12, %cst_11 {dimension_numbers = #tpu.dot_dimension_numbers<[1], [0], [0], [1], [0, 0, 1, 1], [], []>} : vector<16x256xf32>, vector<256x128xf32>, vector<16x128xf32> -> vector<16x128xf32>
    %14 = arith.addf %11, %13 : vector<16x128xf32>
    %c0_12 = arith.constant 0 : index
    %c0_13 = arith.constant 0 : index
    %15 = vector.load %arg8[%c0_12, %c0_13] : memref<16x128xf32, #tpu.memory_space<vmem>>, vector<16x128xf32>
    tpu.vector_store %arg8[%c0_12, %c0_13], %14 {strides = array<i32>} : memref<16x128xf32, #tpu.memory_space<vmem>>, vector<16x128xf32>,
    %c0_i32_14 = arith.constant 0 : i32
    %16 = arith.cmpi eq, %arg1, %c0_i32_14 : i32
    %17 = arith.extui %16 : i1 to i32
    %c0_i32_15 = arith.constant 0 : i32
    %18 = arith.cmpi ne, %17, %c0_i32_15 : i32
    scf.if %18 {
      %c0_16 = arith.constant 0 : index
      %c0_17 = arith.constant 0 : index
      %19 = vector.load %arg8[%c0_16, %c0_17] : memref<16x128xf32, #tpu.memory_space<vmem>>, vector<16x128xf32>
      %c0_18 = arith.constant 0 : index
      %c0_19 = arith.constant 0 : index
      %20 = vector.load %arg6[%c0_18, %c0_19] : memref<1x128xf32, #tpu.memory_space<vmem>>, vector<1x128xf32>
      %21 = vector.broadcast %20 : vector<1x128xf32> to vector<16x128xf32>
      %22 = arith.addf %19, %21 : vector<16x128xf32>
      %c0_20 = arith.constant 0 : index
      %c0_21 = arith.constant 0 : index
      %23 = vector.load %arg7[%c0_20, %c0_21] : memref<16x128xf32, #tpu.memory_space<vmem>>, vector<16x128xf32>
      tpu.vector_store %arg7[%c0_20, %c0_21], %22 {strides = array<i32>} : memref<16x128xf32, #tpu.memory_space<vmem>>, vector<16x128xf32>,
    } else {
    }
    return
  }
  func.func @transform_0(%arg0: i32, %arg1: i32) -> (i32, i32) {
    %c0_i32 = arith.constant 0 : i32
    %c0_i32_0 = arith.constant 0 : i32
    return %arg0, %c0_i32 : i32, i32
  }
  func.func @transform_1(%arg0: i32, %arg1: i32) -> (i32, i32) {
    %c0_i32 = arith.constant 0 : i32
    %c0_i32_0 = arith.constant 0 : i32
    return %c0_i32, %arg1 : i32, i32
  }
  func.func @transform_2(%arg0: i32, %arg1: i32) -> (i32, i32) {
    %c0_i32 = arith.constant 0 : i32
    %c0_i32_0 = arith.constant 0 : i32
    return %c0_i32, %arg1 : i32, i32
  }
  func.func @transform_3(%arg0: i32, %arg1: i32) -> (i32, i32) {
    %c0_i32 = arith.constant 0 : i32
    %c0_i32_0 = arith.constant 0 : i32
    return %arg1, %c0_i32 : i32, i32
  }
  func.func @transform_4(%arg0: i32, %arg1: i32) -> (i32, i32) {
    %c0_i32 = arith.constant 0 : i32
    %c0_i32_0 = arith.constant 0 : i32
    %c0_i32_1 = arith.constant 0 : i32
    return %c0_i32, %c0_i32_0 : i32, i32
  }
  func.func @transform_5(%arg0: i32, %arg1: i32) -> (i32, i32) {
    %c0_i32 = arith.constant 0 : i32
    %c0_i32_0 = arith.constant 0 : i32
    return %arg0, %c0_i32 : i32, i32
  }
}

</mosaic_0001>

<llo_original>
// kernel: tpu_custom_call.1
$region0: #{tpu_custom_call.1}
  #allocation0 [shape = 'u32[]', space=smem, size = 0x4, offset = 0x4, fixed_abs, tag = 'smem constant byte address 0x4 - core index']
  #allocation1 [shape = 'u32[72,128]{1,0:T(1,128)}', space=vmem, size = 0x9000, scoped, tag = 'internal scratch']
  #allocation2 [shape = 'f32[16,128]{1,0:T(8,128)}', space=vmem, size = 0x2000, scoped, tag = 'scratch operand']
  %s0 = inlined_call_operand.hbm [shape: f32[16,32], index: 0, kind: input, shape index: {}]
  %s1 = inlined_call_operand.hbm [shape: f32[32,256], index: 1, kind: input, shape index: {}]
  %s2 = inlined_call_operand.hbm [shape: f32[1,256], index: 2, kind: input, shape index: {}]
  %s3 = inlined_call_operand.hbm [shape: f32[256,128], index: 3, kind: input, shape index: {}]
  %s4 = inlined_call_operand.vmem [shape: f32[1,128], index: 4, kind: input, shape index: {}]
  %s5 = inlined_call_operand.hbm [shape: f32[16,128], index: 5, kind: output, shape index: {}]
  %s6 = sld [smem:[#allocation0]]
  $region54: #{tpu_custom_call.1} parent=0
    _
  %s8 = ssub.s32 1, %s6
  %s9 = scalar_select 0, %s8, %s6
  $region1: #{tpu_custom_call.1} parent=0
    #allocation3 [shape = 'u8[8192]{0}', space=vmem, size = 0x2000, scoped, tag = 'input window, operand 0, single buffered']
    #allocation4 [shape = 's32[1]{0}', space=sflag, size = 0x4, scoped, tag = 'scoped memory for tpu_custom_call.1']
    #allocation5 [shape = 's32[1]{0}', space=sflag, size = 0x4, scoped, tag = 'scoped memory for tpu_custom_call.1']
    #allocation6 [shape = 'u8[32768]{0}', space=vmem, size = 0x8000, scoped, tag = 'input window, operand 1, single buffered']
    #allocation7 [shape = 's32[1]{0}', space=sflag, size = 0x4, scoped, tag = 'scoped memory for tpu_custom_call.1']
    #allocation8 [shape = 'u8[1024]{0}', space=vmem, size = 0x400, scoped, tag = 'input window, operand 2, single buffered']
    #allocation9 [shape = 'u8[131072]{0}', space=vmem, size = 0x20000, scoped, tag = 'input window, operand 3, single buffered']
    #allocation10 [shape = 's32[1]{0}', space=sflag, size = 0x4, scoped, tag = 'scoped memory for tpu_custom_call.1']
    #allocation11 [shape = 'u8[8192]{0}', space=vmem, size = 0x2000, scoped, tag = 'output window, operand 0, single buffered']
    %10 = vsyncpa [#allocation4], 0
    %11 = vsyncpa [#allocation7], 0
    %12 = vsyncpa [#allocation10], 0
    %13 = vsyncpa [#allocation5], 0
    // Predicated region
    $region2: #{tpu_custom_call.1} parent=1 // pred_check
      _
    $region3: #{tpu_custom_call.1} parent=1 // pred_check_branch
      %15 = sbr.rel (0) target = $region5
    $region4: #{tpu_custom_call.1} parent=1 // pred_region
      %17 = vsyncadd [#allocation4], 0
      %s18 = sshll.u32 %s0, 4
      %s19 = int_to_ptr.hbm [resolvable:$true] %s18
      %s20 = sshll.u32 [#allocation3], 4
      %s21 = int_to_ptr.vmem [resolvable:$true] %s20
      %26 = dma.hbm_to_vmem [thread:$0]  %s19, 256, %s21, [#allocation4], 128, 128, 8
    $region5: #{tpu_custom_call.1} parent=1 // pred_fallthru
      _
    // Predicated region
    $region6: #{tpu_custom_call.1} parent=1 // pred_check
      _
    $region7: #{tpu_custom_call.1} parent=1 // pred_check_branch
      %28 = sbr.rel (0) target = $region9
    $region8: #{tpu_custom_call.1} parent=1 // pred_region
      %30 = vsyncadd [#allocation7], 0
      %s31 = sshll.u32 %s1, 4
      %s32 = int_to_ptr.hbm [resolvable:$true] %s31
      %s33 = sshll.u32 [#allocation6], 4
      %s34 = int_to_ptr.vmem [resolvable:$true] %s33
      %39 = dma.hbm_to_vmem [thread:$0]  %s32, 1024, %s34, [#allocation7], 256, 256, 16
    $region9: #{tpu_custom_call.1} parent=1 // pred_fallthru
      _
    // Predicated region
    $region10: #{tpu_custom_call.1} parent=1 // pred_check
      _
    $region11: #{tpu_custom_call.1} parent=1 // pred_check_branch
      %41 = sbr.rel (0) target = $region13
    $region12: #{tpu_custom_call.1} parent=1 // pred_region
      %43 = vsyncadd [#allocation7], 0
      %s45 = sshll.u32 %s2, 4
      %s46 = int_to_ptr.hbm [resolvable:$true] %s45
      %s47 = sshll.u32 [#allocation8], 4
      %s48 = int_to_ptr.vmem [resolvable:$true] %s47
      %50 = dma.hbm_to_vmem [thread:$0]  %s46, 32, %s48, [#allocation7]
    $region13: #{tpu_custom_call.1} parent=1 // pred_fallthru
      _
    // Predicated region
    $region14: #{tpu_custom_call.1} parent=1 // pred_check
      _
    $region15: #{tpu_custom_call.1} parent=1 // pred_check_branch
      %52 = sbr.rel (0) target = $region17
    $region16: #{tpu_custom_call.1} parent=1 // pred_region
      %54 = vsyncadd [#allocation10], 0
      %s55 = sshll.u32 %s3, 4
      %s56 = int_to_ptr.hbm [resolvable:$true] %s55
      %s57 = sshll.u32 [#allocation9], 4
      %s58 = int_to_ptr.vmem [resolvable:$true] %s57
      %63 = dma.hbm_to_vmem [thread:$0]  %s56, 4096, %s58, [#allocation10], 128, 128, 8
    $region17: #{tpu_custom_call.1} parent=1 // pred_fallthru
      _
    // Predicated region
    $region18: #{tpu_custom_call.1} parent=1 // pred_check
      _
    $region19: #{tpu_custom_call.1} parent=1 // pred_check_branch
      %65 = sbr.rel (0) target = $region21
    $region20: #{tpu_custom_call.1} parent=1 // pred_region
      _
    $region21: #{tpu_custom_call.1} parent=1 // pred_fallthru
      _
    // Predicated region
    $region22: #{tpu_custom_call.1} parent=1 // pred_check
      _
    $region23: #{tpu_custom_call.1} parent=1 // pred_check_branch
      %67 = sbr.rel (0) target = $region25
    $region24: #{tpu_custom_call.1} parent=1 // pred_region
      %69 = dma.done [#allocation4], 256
    $region25: #{tpu_custom_call.1} parent=1 // pred_fallthru
      _
    // Predicated region
    $region26: #{tpu_custom_call.1} parent=1 // pred_check
      _
    $region27: #{tpu_custom_call.1} parent=1 // pred_check_branch
      %71 = sbr.rel (0) target = $region29
    $region28: #{tpu_custom_call.1} parent=1 // pred_region
      %73 = dma.done [#allocation7], 1024
    $region29: #{tpu_custom_call.1} parent=1 // pred_fallthru
      _
    // Predicated region
    $region30: #{tpu_custom_call.1} parent=1 // pred_check
      _
    $region31: #{tpu_custom_call.1} parent=1 // pred_check_branch
      %75 = sbr.rel (0) target = $region33
    $region32: #{tpu_custom_call.1} parent=1 // pred_region
      %77 = dma.done [#allocation7], 32
    $region33: #{tpu_custom_call.1} parent=1 // pred_fallthru
      _
    // Predicated region
    $region34: #{tpu_custom_call.1} parent=1 // pred_check
      _
    $region35: #{tpu_custom_call.1} parent=1 // pred_check_branch
      %79 = sbr.rel (0) target = $region37
    $region36: #{tpu_custom_call.1} parent=1 // pred_region
      %81 = dma.done [#allocation10], 4096
    $region37: #{tpu_custom_call.1} parent=1 // pred_fallthru
      _
    %p82 = scmp.eq.s32.totalorder 0, 0
    // Predicated region
    $region38: #{tpu_custom_call.1} parent=1 // pred_check
      %p83 = pneg %p82
    $region39: #{tpu_custom_call.1} parent=1 // pred_check_branch
      %85 = sbr.rel (%p83) target = $region41
    $region40: #{tpu_custom_call.1} parent=1 // pred_region
      %86 = vst [vmem:[#allocation2] sm:$0xff] 0.0
      %87 = vst [vmem:[#allocation2 + $0x8] sm:$0xff] 0.0
    $region41: #{tpu_custom_call.1} parent=1 // pred_fallthru
      _
    %v88 = vld [vmem:[#allocation3] sm:$0xff]
    %v89 = vld [vmem:[#allocation3 + $0x8] sm:$0xff]
    %v90 = vld [vmem:[#allocation6] sm:$0xff]
    %v91 = vld [vmem:[#allocation6 + $0x8] sm:$0xff]
    %v92 = vld [vmem:[#allocation6 + $0x10] sm:$0xff]
    %v93 = vld [vmem:[#allocation6 + $0x18] sm:$0xff]
    %v94 = vld [vmem:[#allocation6 + $0x20] sm:$0xff]
    %v95 = vld [vmem:[#allocation6 + $0x28] sm:$0xff]
    %v96 = vld [vmem:[#allocation6 + $0x30] sm:$0xff]
    %v97 = vld [vmem:[#allocation6 + $0x38] sm:$0xff]
    %v98 = vld [vmem:[#allocation8] sm:$0x3]
    %v100 = vperm.slane %v98, 0
    %v101 = vperm.slane %v98, 1
    %vm104 = vcmask 261120
    %v106 = vsel %vm104, %v88, 0
    %v109 = vsel %vm104, %v89, 0
    %111 = vmatpush.msra.mxu0 0.0
    %112 = vmatpush.msra.mxu0 0.0
    %113 = vmatpush.msra.mxu0 0.0
    %114 = vmatpush.msra.mxu0 0.0
    %115 = vmatpush.msra.mxu0 0.0
    %116 = vmatpush.msra.mxu0 0.0
    %117 = vmatpush.msra.mxu0 0.0
    %118 = vmatpush.msra.mxu0 0.0
    %119 = vmatpush.msra.mxu0 0.0
    %120 = vmatpush.msra.mxu0 0.0
    %121 = vmatpush.msra.mxu0 0.0
    %122 = vmatpush.msra.mxu0 0.0
    %123 = vmatpush.msra.mxu0 %v96
    %124 = vmatpush.msra.mxu0 %v94
    %125 = vmatpush.msra.mxu0 %v92
    %126 = vmatpush.msra.mxu0 %v90
    %127 = vmatmul.f32.gmra.mxu0 %v106
    %v128 = vpop.f32.mrf.mxu0
    %v129 = vadd.f32 %v100, %v128
    %130 = vmatmul.f32.gmra.mxu0 %v109
    %v131 = vpop.f32.mrf.mxu0
    %v132 = vadd.f32 %v100, %v131
    %133 = vdwg.mxu0
    %134 = vmatpush.msra.mxu0 0.0
    %135 = vmatpush.msra.mxu0 0.0
    %136 = vmatpush.msra.mxu0 0.0
    %137 = vmatpush.msra.mxu0 0.0
    %138 = vmatpush.msra.mxu0 0.0
    %139 = vmatpush.msra.mxu0 0.0
    %140 = vmatpush.msra.mxu0 0.0
    %141 = vmatpush.msra.mxu0 0.0
    %142 = vmatpush.msra.mxu0 0.0
    %143 = vmatpush.msra.mxu0 0.0
    %144 = vmatpush.msra.mxu0 0.0
    %145 = vmatpush.msra.mxu0 0.0
    %146 = vmatpush.msra.mxu0 %v97
    %147 = vmatpush.msra.mxu0 %v95
    %148 = vmatpush.msra.mxu0 %v93
    %149 = vmatpush.msra.mxu0 %v91
    %150 = vmatmul.f32.gmra.mxu0 %v106
    %v151 = vpop.f32.mrf.mxu0
    %v152 = vadd.f32 %v101, %v151
    %153 = vmatmul.f32.gmra.mxu0 %v109
    %v154 = vpop.f32.mrf.mxu0
    %v155 = vadd.f32 %v101, %v154
    %156 = vdwg.mxu0
    %v157 = vmax.f32 %v129, 0.0
    %v158 = vmax.f32 %v152, 0.0
    %v159 = vmax.f32 %v132, 0.0
    %v160 = vmax.f32 %v155, 0.0
    %v161 = vld [vmem:[#allocation2] sm:$0xff]
    %v162 = vld [vmem:[#allocation2 + $0x8] sm:$0xff]
    %v163 = vld [vmem:[#allocation9] sm:$0xff]
    %v164 = vld [vmem:[#allocation9 + $0x8] sm:$0xff]
    %v165 = vld [vmem:[#allocation9 + $0x10] sm:$0xff]
    %v166 = vld [vmem:[#allocation9 + $0x18] sm:$0xff]
    %v167 = vld [vmem:[#allocation9 + $0x20] sm:$0xff]
    %v168 = vld [vmem:[#allocation9 + $0x28] sm:$0xff]
    %v169 = vld [vmem:[#allocation9 + $0x30] sm:$0xff]
    %v170 = vld [vmem:[#allocation9 + $0x38] sm:$0xff]
    %v171 = vld [vmem:[#allocation9 + $0x40] sm:$0xff]
    %v172 = vld [vmem:[#allocation9 + $0x48] sm:$0xff]
    %v173 = vld [vmem:[#allocation9 + $0x50] sm:$0xff]
    %v174 = vld [vmem:[#allocation9 + $0x58] sm:$0xff]
    %v175 = vld [vmem:[#allocation9 + $0x60] sm:$0xff]
    %v176 = vld [vmem:[#allocation9 + $0x68] sm:$0xff]
    %v177 = vld [vmem:[#allocation9 + $0x70] sm:$0xff]
    %v178 = vld [vmem:[#allocation9 + $0x78] sm:$0xff]
    %v179 = vld [vmem:[#allocation9 + $0x80] sm:$0xff]
    %v180 = vld [vmem:[#allocation9 + $0x88] sm:$0xff]
    %v181 = vld [vmem:[#allocation9 + $0x90] sm:$0xff]
    %v182 = vld [vmem:[#allocation9 + $0x98] sm:$0xff]
    %v183 = vld [vmem:[#allocation9 + $0xa0] sm:$0xff]
    %v184 = vld [vmem:[#allocation9 + $0xa8] sm:$0xff]
    %v185 = vld [vmem:[#allocation9 + $0xb0] sm:$0xff]
    %v186 = vld [vmem:[#allocation9 + $0xb8] sm:$0xff]
    %v187 = vld [vmem:[#allocation9 + $0xc0] sm:$0xff]
    %v188 = vld [vmem:[#allocation9 + $0xc8] sm:$0xff]
    %v189 = vld [vmem:[#allocation9 + $0xd0] sm:$0xff]
    %v190 = vld [vmem:[#allocation9 + $0xd8] sm:$0xff]
    %v191 = vld [vmem:[#allocation9 + $0xe0] sm:$0xff]
    %v192 = vld [vmem:[#allocation9 + $0xe8] sm:$0xff]
    %v193 = vld [vmem:[#allocation9 + $0xf0] sm:$0xff]
    %v194 = vld [vmem:[#allocation9 + $0xf8] sm:$0xff]
    %195 = vmatpush.msra.mxu0 %v178
    %196 = vmatpush.msra.mxu0 %v177
    %197 = vmatpush.msra.mxu0 %v176
    %198 = vmatpush.msra.mxu0 %v175
    %199 = vmatpush.msra.mxu0 %v174
    %200 = vmatpush.msra.mxu0 %v173
    %201 = vmatpush.msra.mxu0 %v172
    %202 = vmatpush.msra.mxu0 %v171
    %203 = vmatpush.msra.mxu0 %v170
    %204 = vmatpush.msra.mxu0 %v169
    %205 = vmatpush.msra.mxu0 %v168
    %206 = vmatpush.msra.mxu0 %v167
    %207 = vmatpush.msra.mxu0 %v166
    %208 = vmatpush.msra.mxu0 %v165
    %209 = vmatpush.msra.mxu0 %v164
    %210 = vmatpush.msra.mxu0 %v163
    %211 = vmatmul.f32.gmra.mxu0 %v157
    %v212 = vpop.f32.mrf.mxu0
    %v213 = vadd.f32 0.0, %v212
    %214 = vmatmul.f32.gmra.mxu0 %v159
    %v215 = vpop.f32.mrf.mxu0
    %v216 = vadd.f32 0.0, %v215
    %217 = vdwg.mxu0
    %218 = vmatpush.msra.mxu0 %v194
    %219 = vmatpush.msra.mxu0 %v193
    %220 = vmatpush.msra.mxu0 %v192
    %221 = vmatpush.msra.mxu0 %v191
    %222 = vmatpush.msra.mxu0 %v190
    %223 = vmatpush.msra.mxu0 %v189
    %224 = vmatpush.msra.mxu0 %v188
    %225 = vmatpush.msra.mxu0 %v187
    %226 = vmatpush.msra.mxu0 %v186
    %227 = vmatpush.msra.mxu0 %v185
    %228 = vmatpush.msra.mxu0 %v184
    %229 = vmatpush.msra.mxu0 %v183
    %230 = vmatpush.msra.mxu0 %v182
    %231 = vmatpush.msra.mxu0 %v181
    %232 = vmatpush.msra.mxu0 %v180
    %233 = vmatpush.msra.mxu0 %v179
    %234 = vmatmul.f32.gmra.mxu0 %v158
    %v235 = vpop.f32.mrf.mxu0
    %v236 = vadd.f32 %v213, %v235
    %237 = vmatmul.f32.gmra.mxu0 %v160
    %v238 = vpop.f32.mrf.mxu0
    %v239 = vadd.f32 %v216, %v238
    %240 = vdwg.mxu0
    %v241 = vadd.f32 %v161, %v236
    %v242 = vadd.f32 %v162, %v239
    %243 = vst [vmem:[#allocation2] sm:$0xff] %v241
    %244 = vst [vmem:[#allocation2 + $0x8] sm:$0xff] %v242
    // Predicated region
    $region42: #{tpu_custom_call.1} parent=1 // pred_check
      %p245 = pneg %p82
    $region43: #{tpu_custom_call.1} parent=1 // pred_check_branch
      %247 = sbr.rel (%p245) target = $region45
    $region44: #{tpu_custom_call.1} parent=1 // pred_region
      %v248 = vld [vmem:[#allocation2] sm:$0xff]
      %v249 = vld [vmem:[#allocation2 + $0x8] sm:$0xff]
      %v250 = vld [vmem:[%s4] sm:$0x1]
      %v252 = vperm.slane %v250, 0
      %v254 = vadd.f32 %v248, %v252
      %v255 = vadd.f32 %v249, %v252
      %256 = vst [vmem:[#allocation11] sm:$0xff] %v254
      %257 = vst [vmem:[#allocation11 + $0x8] sm:$0xff] %v255
    $region45: #{tpu_custom_call.1} parent=1 // pred_fallthru
      _
    // Predicated region
    $region46: #{tpu_custom_call.1} parent=1 // pred_check
      _
    $region47: #{tpu_custom_call.1} parent=1 // pred_check_branch
      %259 = sbr.rel (0) target = $region49
    $region48: #{tpu_custom_call.1} parent=1 // pred_region
      %261 = vsyncadd [#allocation5], 0
      %s262 = sshll.u32 [#allocation11], 4
      %s263 = int_to_ptr.vmem [resolvable:$true] %s262
      %s264 = sshll.u32 %s5, 4
      %s265 = int_to_ptr.hbm [resolvable:$true] %s264
      %270 = dma.vmem_to_hbm [thread:$0]  %s263, 256, %s265, [#allocation5], 128, 128, 8
    $region49: #{tpu_custom_call.1} parent=1 // pred_fallthru
      _
    // Predicated region
    $region50: #{tpu_custom_call.1} parent=1 // pred_check
      _
    $region51: #{tpu_custom_call.1} parent=1 // pred_check_branch
      %272 = sbr.rel (0) target = $region53
    $region52: #{tpu_custom_call.1} parent=1 // pred_region
      %274 = dma.done [#allocation5], 256
    $region53: #{tpu_custom_call.1} parent=1 // pred_fallthru
      _
    %275 = vsyncpa [#allocation4], 1
    %276 = vsyncpa [#allocation7], 1
    %277 = vsyncpa [#allocation10], 1
    %278 = vsyncpa [#allocation5], 1

</llo_original>
